<compile_context>
chip_gen: v6e
topology: v6e:2x2x1
jax: 0.10.0
libtpu: 0.0.40
codegen_flags: <defaults>
</compile_context>

<pallas_src>
import functools

import jax
import jax.numpy as jnp
from jax.experimental import pallas as pl
from jax.experimental.pallas import tpu as pltpu


def _round_up(x, m):
    return ((x + m - 1) // m) * m


def _cdiv(a, b):
    return (a + b - 1) // b


def actor_kernel(x_ref, w1_ref, b1_ref, w2_ref, b2_ref, w3t_ref, b3_ref,
                 out_ref, *, max_action, n_states, n_actions):
    # ---- fc1 + ReLU: VPU broadcast-MAC over the tiny state dim (K << 128).
    # x_ref: (tile_b, n_states), w1_ref: (n_states, H)
    h1 = x_ref[:, 0:1] * w1_ref[0:1, :]
    for s in range(1, n_states):
        h1 = h1 + x_ref[:, s:s + 1] * w1_ref[s:s + 1, :]
    h1 = jnp.maximum(h1 + b1_ref[...], 0.0)

    # ---- fc2 + LeakyReLU (slope 0.01): the one lane-dense MXU matmul.
    # Cast dot operands to the weight dtype (bf16 on v6e/v7x for ~3x MXU rate);
    # accumulation stays f32 and all elementwise math stays f32.
    h2 = jnp.dot(h1.astype(w2_ref.dtype), w2_ref[...],
                 preferred_element_type=jnp.float32) + b2_ref[...]
    h2 = jnp.maximum(h2, 0.01 * h2)

    # ---- fc3 + tanh * max_action: per-action lane reduction, so only the
    # live action columns are materialized / written back.
    # w3t_ref: (n_actions, 128) (fc3 weight stored transposed), b3_ref: (1, n_actions)
    for a in range(n_actions):
        y = jnp.sum(h2 * w3t_ref[a:a + 1, :], axis=-1, keepdims=True)
        y = y + b3_ref[:, a:a + 1]
        out_ref[:, a:a + 1] = jnp.tanh(y) * max_action


def init_actor_params(key, n_states, n_hiddens, n_actions):
    """PyTorch nn.Linear-style uniform init; weights stored as (in, out)."""
    def linear(k, fan_in, fan_out):
        kw, kb = jax.random.split(k)
        bound = 1.0 / float(fan_in) ** 0.5
        w = jax.random.uniform(kw, (fan_in, fan_out), jnp.float32,
                               -bound, bound)
        b = jax.random.uniform(kb, (1, fan_out), jnp.float32, -bound, bound)
        return w, b

    k1, k2, k3 = jax.random.split(key, 3)
    w1, b1 = linear(k1, n_states, n_hiddens)
    w2, b2 = linear(k2, n_hiddens, 128)
    w3, b3 = linear(k3, 128, n_actions)
    return (w1, b1, w2, b2, w3, b3)


def prepare_actor_params(params, n_states, n_hiddens, n_actions, *,
                         mxu_dtype=jnp.float32):
    """Kernel-layout params.

    Only the hidden dim is zero-padded to a multiple of 128 (exact through
    relu: padded hidden units are identically 0 and their fc2 rows are 0).
    State/action dims are left unpadded.  fc3 weight is stored transposed.
    `mxu_dtype=jnp.bfloat16` stores only the fc2 (MXU) weight in bf16.
    """
    w1, b1, w2, b2, w3, b3 = params
    H = _round_up(n_hiddens, 128)

    w1_p = jnp.zeros((n_states, H), jnp.float32).at[:, :n_hiddens].set(w1)
    b1_p = jnp.zeros((1, H), jnp.float32).at[:, :n_hiddens].set(b1)
    w2_p = jnp.zeros((H, 128), jnp.float32).at[:n_hiddens, :].set(w2)
    w2_p = w2_p.astype(mxu_dtype)
    b2_p = b2.astype(jnp.float32)                 # (1, 128)
    w3t_p = jnp.transpose(w3).astype(jnp.float32)  # (n_actions, 128)
    b3_p = b3.astype(jnp.float32)                 # (1, n_actions)
    return (w1_p, b1_p, w2_p, b2_p, w3t_p, b3_p)


def actor_forward(x, padded_params, *, max_action, n_actions):
    """x: (B, n_states) -> (B, n_actions) float32."""
    w1, b1, w2, b2, w3t, b3 = padded_params
    B, n_states = x.shape

    # Row tile: aim for >=4 grid steps (>=2 per TensorCore on v7x, and enough
    # steps for DMA/compute overlap), capped at 1024 rows for big batches.
    B8 = _round_up(B, 8)
    tile_b = min(1024, max(8, _round_up(_cdiv(B8, 4), 8)))
    B_pad = _round_up(B, tile_b)

    x_p = x.astype(jnp.float32)
    if B_pad != B:
        x_p = jnp.pad(x_p, ((0, B_pad - B), (0, 0)))

    const = lambda i: (0, 0)   # weights/biases: same block every grid step

    out = pl.pallas_call(
        functools.partial(actor_kernel, max_action=float(max_action),
                          n_states=n_states, n_actions=n_actions),
        out_shape=jax.ShapeDtypeStruct((B_pad, n_actions), jnp.float32),
        grid=(B_pad // tile_b,),
        in_specs=[
            pl.BlockSpec((tile_b, n_states), lambda i: (i, 0)),  # x rows tiled
            pl.BlockSpec(w1.shape, const),                       # VMEM-resident
            pl.BlockSpec(b1.shape, const),
            pl.BlockSpec(w2.shape, const),
            pl.BlockSpec(b2.shape, const),
            pl.BlockSpec(w3t.shape, const),
            pl.BlockSpec(b3.shape, const),
        ],
        out_specs=pl.BlockSpec((tile_b, n_actions), lambda i: (i, 0)),
        compiler_params=pltpu.CompilerParams(
            dimension_semantics=("parallel",)),
    )(x_p, w1, b1, w2, b2, w3t, b3)

    return out[:B] if B_pad != B else out


# jit the wrapper so pad/slice fuse with the pallas_call and host dispatch
# overhead disappears for RL-sized batches.
actor_forward_jit = jax.jit(actor_forward,
                            static_argnames=("max_action", "n_actions"))


def actor_ref(x, params, max_action):
    """Pure-JAX reference of the PyTorch Actor forward."""
    w1, b1, w2, b2, w3, b3 = params
    h1 = jnp.maximum(x @ w1 + b1, 0.0)
    h2 = h1 @ w2 + b2
    h2 = jnp.where(h2 > 0.0, h2, 0.01 * h2)
    return jnp.tanh(h2 @ w3 + b3) * max_action


if __name__ == "__main__":
    # MountainCarContinuous-like dims: 2 states, 32 hidden, 1 action.
    n_states, n_hiddens, n_actions = 2, 32, 1
    max_action = 1.0
    batch = 8

    key = jax.random.PRNGKey(0)
    k_params, k_x = jax.random.split(key)

    params = init_actor_params(k_params, n_states, n_hiddens, n_actions)
    x = jax.random.normal(k_x, (batch, n_states), jnp.float32)
    ref = actor_ref(x, params, max_action)

    # f32 MXU path: exact vs. the f32 reference.
    padded_f32 = prepare_actor_params(params, n_states, n_hiddens, n_actions)
    out = actor_forward_jit(x, padded_f32, max_action=max_action,
                            n_actions=n_actions)
    out = jax.block_until_ready(out)
    assert out.shape == (batch, n_actions), out.shape
    assert jnp.allclose(out, ref, atol=1e-5, rtol=1e-5), (out, ref)

    # bf16 fc2 operands (v6e/v7x MXU-rate path): looser tolerance.
    padded_bf16 = prepare_actor_params(params, n_states, n_hiddens, n_actions,
                                       mxu_dtype=jnp.bfloat16)
    out_bf16 = actor_forward_jit(x, padded_bf16, max_action=max_action,
                                 n_actions=n_actions)
    out_bf16 = jax.block_until_ready(out_bf16)
    assert jnp.allclose(out_bf16, ref, atol=3e-2, rtol=3e-2), (out_bf16, ref)

    print("KERNEL_OK")
</pallas_src>

<mosaic_0001>
module attributes {stable_mosaic.version = 11 : i64} {
  func.func @actor_kernel(%arg0: i32, %arg1: memref<8x2xf32, #tpu.memory_space<vmem>>, %arg2: memref<2x128xf32, #tpu.memory_space<vmem>>, %arg3: memref<1x128xf32, #tpu.memory_space<vmem>>, %arg4: memref<128x128xf32, #tpu.memory_space<vmem>>, %arg5: memref<1x128xf32, #tpu.memory_space<vmem>>, %arg6: memref<1x128xf32, #tpu.memory_space<vmem>>, %arg7: memref<1x1xf32, #tpu.memory_space<vmem>>, %arg8: memref<8x1xf32, #tpu.memory_space<vmem>>) attributes {dimension_semantics = [#tpu.dimension_semantics<parallel>], iteration_bounds = array<i64: 1>, scalar_prefetch = 0 : i64, scratch_operands = 0 : i64, tpu.core_type = #tpu.core_type<tc>, window_params = [{transform_indices = @transform_0, window_bounds = array<i64: 8, 2>}, {pipeline_mode = #tpu.pipeline_mode<synchronous>, transform_indices = @transform_1, window_bounds = array<i64: 2, 128>}, {pipeline_mode = #tpu.pipeline_mode<synchronous>, transform_indices = @transform_2, window_bounds = array<i64: 1, 128>}, {pipeline_mode = #tpu.pipeline_mode<synchronous>, transform_indices = @transform_3, window_bounds = array<i64: 128, 128>}, {pipeline_mode = #tpu.pipeline_mode<synchronous>, transform_indices = @transform_4, window_bounds = array<i64: 1, 128>}, {pipeline_mode = #tpu.pipeline_mode<synchronous>, transform_indices = @transform_5, window_bounds = array<i64: 1, 128>}, {pipeline_mode = #tpu.pipeline_mode<synchronous>, transform_indices = @transform_6, window_bounds = array<i64: 1, 1>}, {transform_indices = @transform_7, window_bounds = array<i64: 8, 1>}]} {
    %c0 = arith.constant 0 : index
    %c0_0 = arith.constant 0 : index
    %0 = vector.load %arg1[%c0, %c0_0] : memref<8x2xf32, #tpu.memory_space<vmem>>, vector<8x1xf32>
    %c0_1 = arith.constant 0 : index
    %c0_2 = arith.constant 0 : index
    %1 = vector.load %arg2[%c0_1, %c0_2] : memref<2x128xf32, #tpu.memory_space<vmem>>, vector<1x128xf32>
    %2 = vector.broadcast %0 : vector<8x1xf32> to vector<8x128xf32>
    %3 = vector.broadcast %1 : vector<1x128xf32> to vector<8x128xf32>
    %4 = arith.mulf %2, %3 : vector<8x128xf32>
    %c0_3 = arith.constant 0 : index
    %c1 = arith.constant 1 : index
    %5 = vector.load %arg1[%c0_3, %c1] : memref<8x2xf32, #tpu.memory_space<vmem>>, vector<8x1xf32>
    %c1_4 = arith.constant 1 : index
    %c0_5 = arith.constant 0 : index
    %6 = vector.load %arg2[%c1_4, %c0_5] : memref<2x128xf32, #tpu.memory_space<vmem>>, vector<1x128xf32>
    %7 = vector.broadcast %5 : vector<8x1xf32> to vector<8x128xf32>
    %8 = vector.broadcast %6 : vector<1x128xf32> to vector<8x128xf32>
    %9 = arith.mulf %7, %8 : vector<8x128xf32>
    %10 = arith.addf %4, %9 : vector<8x128xf32>
    %c0_6 = arith.constant 0 : index
    %c0_7 = arith.constant 0 : index
    %11 = vector.load %arg3[%c0_6, %c0_7] : memref<1x128xf32, #tpu.memory_space<vmem>>, vector<1x128xf32>
    %12 = vector.broadcast %11 : vector<1x128xf32> to vector<8x128xf32>
    %13 = arith.addf %10, %12 : vector<8x128xf32>
    %cst = arith.constant 0.000000e+00 : f32
    %14 = vector.broadcast %cst : f32 to vector<8x128xf32>
    %15 = arith.maximumf %13, %14 : vector<8x128xf32>
    %c0_8 = arith.constant 0 : index
    %c0_9 = arith.constant 0 : index
    %16 = vector.load %arg4[%c0_8, %c0_9] : memref<128x128xf32, #tpu.memory_space<vmem>>, vector<128x128xf32>
    %cst_10 = arith.constant dense<0.000000e+00> : vector<8x128xf32>
    %17 = tpu.matmul %15, %16, %cst_10 {dimension_numbers = #tpu.dot_dimension_numbers<[1], [0], [0], [1], [0, 0, 1, 1], [], []>} : vector<8x128xf32>, vector<128x128xf32>, vector<8x128xf32> -> vector<8x128xf32>
    %c0_11 = arith.constant 0 : index
    %c0_12 = arith.constant 0 : index
    %18 = vector.load %arg5[%c0_11, %c0_12] : memref<1x128xf32, #tpu.memory_space<vmem>>, vector<1x128xf32>
    %19 = vector.broadcast %18 : vector<1x128xf32> to vector<8x128xf32>
    %20 = arith.addf %17, %19 : vector<8x128xf32>
    %cst_13 = arith.constant 0.00999999977 : f32
    %21 = vector.broadcast %cst_13 : f32 to vector<8x128xf32>
    %22 = arith.mulf %21, %20 : vector<8x128xf32>
    %23 = arith.maximumf %20, %22 : vector<8x128xf32>
    %c0_14 = arith.constant 0 : index
    %c0_15 = arith.constant 0 : index
    %24 = vector.load %arg6[%c0_14, %c0_15] : memref<1x128xf32, #tpu.memory_space<vmem>>, vector<1x128xf32>
    %25 = vector.broadcast %24 : vector<1x128xf32> to vector<8x128xf32>
    %26 = arith.mulf %23, %25 : vector<8x128xf32>
    %cst_16 = arith.constant dense<0.000000e+00> : vector<8xf32>
    %27 = vector.multi_reduction <add>, %26, %cst_16 [1] : vector<8x128xf32> to vector<8xf32>
    %28 = vector.shape_cast %27 : vector<8xf32> to vector<8x1xf32>
    %c0_17 = arith.constant 0 : index
    %c0_18 = arith.constant 0 : index
    %29 = vector.load %arg7[%c0_17, %c0_18] : memref<1x1xf32, #tpu.memory_space<vmem>>, vector<1x1xf32>
    %30 = vector.broadcast %29 : vector<1x1xf32> to vector<8x1xf32>
    %31 = arith.addf %28, %30 : vector<8x1xf32>
    %32 = math.tanh %31 : vector<8x1xf32>
    %cst_19 = arith.constant 1.000000e+00 : f32
    %33 = vector.broadcast %cst_19 : f32 to vector<8x1xf32>
    %34 = arith.mulf %32, %33 : vector<8x1xf32>
    %c0_20 = arith.constant 0 : index
    %c0_21 = arith.constant 0 : index
    %35 = vector.load %arg8[%c0_20, %c0_21] : memref<8x1xf32, #tpu.memory_space<vmem>>, vector<8x1xf32>
    tpu.vector_store %arg8[%c0_20, %c0_21], %34 {strides = array<i32>} : memref<8x1xf32, #tpu.memory_space<vmem>>, vector<8x1xf32>,
    return
  }
  func.func @transform_0(%arg0: i32) -> (i32, i32) {
    %c0_i32 = arith.constant 0 : i32
    %c0_i32_0 = arith.constant 0 : i32
    return %arg0, %c0_i32 : i32, i32
  }
  func.func @transform_1(%arg0: i32) -> (i32, i32) {
    %c0_i32 = arith.constant 0 : i32
    %c0_i32_0 = arith.constant 0 : i32
    %c0_i32_1 = arith.constant 0 : i32
    return %c0_i32, %c0_i32_0 : i32, i32
  }
  func.func @transform_2(%arg0: i32) -> (i32, i32) {
    %c0_i32 = arith.constant 0 : i32
    %c0_i32_0 = arith.constant 0 : i32
    %c0_i32_1 = arith.constant 0 : i32
    return %c0_i32, %c0_i32_0 : i32, i32
  }
  func.func @transform_3(%arg0: i32) -> (i32, i32) {
    %c0_i32 = arith.constant 0 : i32
    %c0_i32_0 = arith.constant 0 : i32
    %c0_i32_1 = arith.constant 0 : i32
    return %c0_i32, %c0_i32_0 : i32, i32
  }
  func.func @transform_4(%arg0: i32) -> (i32, i32) {
    %c0_i32 = arith.constant 0 : i32
    %c0_i32_0 = arith.constant 0 : i32
    %c0_i32_1 = arith.constant 0 : i32
    return %c0_i32, %c0_i32_0 : i32, i32
  }
  func.func @transform_5(%arg0: i32) -> (i32, i32) {
    %c0_i32 = arith.constant 0 : i32
    %c0_i32_0 = arith.constant 0 : i32
    %c0_i32_1 = arith.constant 0 : i32
    return %c0_i32, %c0_i32_0 : i32, i32
  }
  func.func @transform_6(%arg0: i32) -> (i32, i32) {
    %c0_i32 = arith.constant 0 : i32
    %c0_i32_0 = arith.constant 0 : i32
    %c0_i32_1 = arith.constant 0 : i32
    return %c0_i32, %c0_i32_0 : i32, i32
  }
  func.func @transform_7(%arg0: i32) -> (i32, i32) {
    %c0_i32 = arith.constant 0 : i32
    %c0_i32_0 = arith.constant 0 : i32
    return %arg0, %c0_i32 : i32, i32
  }
}

</mosaic_0001>

<llo_original>
// kernel: actor_forward.1
$region0: #{actor_forward.1}
  #allocation0 [shape = 'u32[]', space=smem, size = 0x4, offset = 0x4, fixed_abs, tag = 'smem constant byte address 0x4 - core index']
  #allocation1 [shape = 'u32[144,128]{1,0:T(1,128)}', space=vmem, size = 0x12000, scoped, tag = 'internal scratch']
  #allocation2 [shape = 'f32[1,1]{1,0:T(1,128)S(1)}', space=vmem, size = 0x200, scoped, tag = 'scoped memory for actor_forward.1']
  %s0 = inlined_call_operand.vmem [shape: f32[8,2], index: 0, kind: input, shape index: {}]
  %s1 = inlined_call_operand.vmem [shape: f32[2,128], index: 1, kind: input, shape index: {}]
  %s2 = inlined_call_operand.vmem [shape: f32[1,128], index: 2, kind: input, shape index: {}]
  %s3 = inlined_call_operand.hbm [shape: f32[128,128], index: 3, kind: input, shape index: {}]
  %s4 = inlined_call_operand.vmem [shape: f32[1,128], index: 4, kind: input, shape index: {}]
  %s5 = inlined_call_operand.vmem [shape: f32[1,128], index: 5, kind: input, shape index: {}]
  %s6 = inlined_call_operand.<no memory space> [shape: f32[1,1], index: 6, kind: input, shape index: {}]
  %s7 = inlined_call_operand.vmem [shape: f32[8,1], index: 7, kind: output, shape index: {}]
  %s8 = sld [smem:[#allocation0]]
  $region42: #{actor_forward.1} parent=0
    _
  %s10 = ssub.s32 1, %s8
  %s11 = scalar_select 0, %s10, %s8
  %v12 = vstv %s6
  %13 = vst [vmem:[#allocation2] sm:$0x1] %v12
  $region1: #{actor_forward.1} parent=0
    #allocation3 [shape = 'u8[65536]{0}', space=vmem, size = 0x10000, scoped, tag = 'input window, operand 3, single buffered']
    #allocation4 [shape = 's32[1]{0}', space=sflag, size = 0x4, scoped, tag = 'scoped memory for actor_forward.1']
    %14 = vsyncpa [#allocation4], 0
    // Predicated region
    $region2: #{actor_forward.1} parent=1 // pred_check
      _
    $region3: #{actor_forward.1} parent=1 // pred_check_branch
      %16 = sbr.rel (0) target = $region5
    $region4: #{actor_forward.1} parent=1 // pred_region
      _
    $region5: #{actor_forward.1} parent=1 // pred_fallthru
      _
    // Predicated region
    $region6: #{actor_forward.1} parent=1 // pred_check
      _
    $region7: #{actor_forward.1} parent=1 // pred_check_branch
      %18 = sbr.rel (0) target = $region9
    $region8: #{actor_forward.1} parent=1 // pred_region
      _
    $region9: #{actor_forward.1} parent=1 // pred_fallthru
      _
    // Predicated region
    $region10: #{actor_forward.1} parent=1 // pred_check
      _
    $region11: #{actor_forward.1} parent=1 // pred_check_branch
      %20 = sbr.rel (0) target = $region13
    $region12: #{actor_forward.1} parent=1 // pred_region
      _
    $region13: #{actor_forward.1} parent=1 // pred_fallthru
      _
    // Predicated region
    $region14: #{actor_forward.1} parent=1 // pred_check
      _
    $region15: #{actor_forward.1} parent=1 // pred_check_branch
      %22 = sbr.rel (0) target = $region17
    $region16: #{actor_forward.1} parent=1 // pred_region
      %s24 = ssub.s32 2048, 2048
      %25 = vsyncadd [#allocation4], %s24
      %s26 = sshll.u32 [#allocation3], 4
      %s27 = int_to_ptr.vmem [resolvable:$true] %s26
      %32 = dma.hbm_to_vmem [thread:$0]  %s3, 2048, %s27, [#allocation4], 128, 128, 8
    $region17: #{actor_forward.1} parent=1 // pred_fallthru
      _
    // Predicated region
    $region18: #{actor_forward.1} parent=1 // pred_check
      _
    $region19: #{actor_forward.1} parent=1 // pred_check_branch
      %34 = sbr.rel (0) target = $region21
    $region20: #{actor_forward.1} parent=1 // pred_region
      _
    $region21: #{actor_forward.1} parent=1 // pred_fallthru
      _
    // Predicated region
    $region22: #{actor_forward.1} parent=1 // pred_check
      _
    $region23: #{actor_forward.1} parent=1 // pred_check_branch
      %36 = sbr.rel (0) target = $region25
    $region24: #{actor_forward.1} parent=1 // pred_region
      _
    $region25: #{actor_forward.1} parent=1 // pred_fallthru
      _
    // Predicated region
    $region26: #{actor_forward.1} parent=1 // pred_check
      _
    $region27: #{actor_forward.1} parent=1 // pred_check_branch
      %38 = sbr.rel (0) target = $region29
    $region28: #{actor_forward.1} parent=1 // pred_region
      _
    $region29: #{actor_forward.1} parent=1 // pred_fallthru
      _
    // Predicated region
    $region30: #{actor_forward.1} parent=1 // pred_check
      _
    $region31: #{actor_forward.1} parent=1 // pred_check_branch
      %40 = sbr.rel (0) target = $region33
    $region32: #{actor_forward.1} parent=1 // pred_region
      %41 = dma.done [#allocation4], 2048
    $region33: #{actor_forward.1} parent=1 // pred_fallthru
      _
    %v42 = vld [vmem:[%s0] sm:$0xff]
    %v43 = vld [vmem:[%s1] sm:$0x1]
    %45 = vset.pattern.permute.xlu0 0
    %46 = vperm.xlu0 %45, %v42
    %v47 = vpop.permute.xlu0 %46
    %v49 = vlaneseq
    %v50 = vshrl.u32 %v49, 7
    %v51 = vsub.s32 0, %v50
    %v52 = vrot.slane %v43, %v51
    %v53 = vmul.f32 %v47, %v52
    %v54 = vld [vmem:[%s1 + $0x1] sm:$0x1]
    %55 = vset.pattern.permute.xlu0 1
    %56 = vperm.xlu0 %55, %v42
    %v57 = vpop.permute.xlu0 %56
    %v59 = vlaneseq
    %v60 = vshrl.u32 %v59, 7
    %v61 = vsub.s32 0, %v60
    %v62 = vrot.slane %v54, %v61
    %v63 = vmul.f32 %v57, %v62
    %v64 = vadd.f32 %v53, %v63
    %v65 = vld [vmem:[%s2] sm:$0x1]
    %v67 = vlaneseq
    %v68 = vshrl.u32 %v67, 7
    %v69 = vsub.s32 0, %v68
    %v70 = vrot.slane %v65, %v69
    %v72 = vadd.f32 %v64, %v70
    %v73 = vmax.f32 %v72, 0.0
    %v74 = vld [vmem:[#allocation3] sm:$0xff]
    %v75 = vld [vmem:[#allocation3 + $0x8] sm:$0xff]
    %v76 = vld [vmem:[#allocation3 + $0x10] sm:$0xff]
    %v77 = vld [vmem:[#allocation3 + $0x18] sm:$0xff]
    %v78 = vld [vmem:[#allocation3 + $0x20] sm:$0xff]
    %v79 = vld [vmem:[#allocation3 + $0x28] sm:$0xff]
    %v80 = vld [vmem:[#allocation3 + $0x30] sm:$0xff]
    %v81 = vld [vmem:[#allocation3 + $0x38] sm:$0xff]
    %v82 = vld [vmem:[#allocation3 + $0x40] sm:$0xff]
    %v83 = vld [vmem:[#allocation3 + $0x48] sm:$0xff]
    %v84 = vld [vmem:[#allocation3 + $0x50] sm:$0xff]
    %v85 = vld [vmem:[#allocation3 + $0x58] sm:$0xff]
    %v86 = vld [vmem:[#allocation3 + $0x60] sm:$0xff]
    %v87 = vld [vmem:[#allocation3 + $0x68] sm:$0xff]
    %v88 = vld [vmem:[#allocation3 + $0x70] sm:$0xff]
    %v89 = vld [vmem:[#allocation3 + $0x78] sm:$0xff]
    %v90 = vld [vmem:[%s4] sm:$0x1]
    %v92 = vlaneseq
    %v93 = vshrl.u32 %v92, 7
    %v94 = vsub.s32 0, %v93
    %v95 = vrot.slane %v90, %v94
    %97 = vmatprep.subr.mxu0 0.0
    %98 = vmatpush1.msra.mxu0 %v89
    %99 = vmatprep.subr.mxu0 0.0
    %100 = vmatpush1.msra.mxu0 %v88
    %101 = vmatprep.subr.mxu0 0.0
    %102 = vmatpush1.msra.mxu0 %v87
    %103 = vmatprep.subr.mxu0 0.0
    %104 = vmatpush1.msra.mxu0 %v86
    %105 = vmatprep.subr.mxu0 0.0
    %106 = vmatpush1.msra.mxu0 %v85
    %107 = vmatprep.subr.mxu0 0.0
    %108 = vmatpush1.msra.mxu0 %v84
    %109 = vmatprep.subr.mxu0 0.0
    %110 = vmatpush1.msra.mxu0 %v83
    %111 = vmatprep.subr.mxu0 0.0
    %112 = vmatpush1.msra.mxu0 %v82
    %113 = vmatprep.subr.mxu0 0.0
    %114 = vmatpush1.msra.mxu0 %v81
    %115 = vmatprep.subr.mxu0 0.0
    %116 = vmatpush1.msra.mxu0 %v80
    %117 = vmatprep.subr.mxu0 0.0
    %118 = vmatpush1.msra.mxu0 %v79
    %119 = vmatprep.subr.mxu0 0.0
    %120 = vmatpush1.msra.mxu0 %v78
    %121 = vmatprep.subr.mxu0 0.0
    %122 = vmatpush1.msra.mxu0 %v77
    %123 = vmatprep.subr.mxu0 0.0
    %124 = vmatpush1.msra.mxu0 %v76
    %125 = vmatprep.subr.mxu0 0.0
    %126 = vmatpush1.msra.mxu0 %v75
    %127 = vmatprep.subr.mxu0 0.0
    %128 = vmatpush1.msra.mxu0 %v74
    %129 = vmatprep.subr.mxu0 0.0
    %130 = vmatpush2.msra.mxu0 0.0
    %131 = vmatprep.subr.mxu0 0.0
    %132 = vmatpush2.msra.mxu0 0.0
    %133 = vmatprep.subr.mxu0 0.0
    %134 = vmatpush2.msra.mxu0 0.0
    %135 = vmatprep.subr.mxu0 0.0
    %136 = vmatpush2.msra.mxu0 0.0
    %137 = vmatprep.subr.mxu0 0.0
    %138 = vmatpush2.msra.mxu0 0.0
    %139 = vmatprep.subr.mxu0 0.0
    %140 = vmatpush2.msra.mxu0 0.0
    %141 = vmatprep.subr.mxu0 0.0
    %142 = vmatpush2.msra.mxu0 0.0
    %143 = vmatprep.subr.mxu0 0.0
    %144 = vmatpush2.msra.mxu0 0.0
    %145 = vmatprep.subr.mxu0 0.0
    %146 = vmatpush2.msra.mxu0 0.0
    %147 = vmatprep.subr.mxu0 0.0
    %148 = vmatpush2.msra.mxu0 0.0
    %149 = vmatprep.subr.mxu0 0.0
    %150 = vmatpush2.msra.mxu0 0.0
    %151 = vmatprep.subr.mxu0 0.0
    %152 = vmatpush2.msra.mxu0 0.0
    %153 = vmatprep.subr.mxu0 0.0
    %154 = vmatpush2.msra.mxu0 0.0
    %155 = vmatprep.subr.mxu0 0.0
    %156 = vmatpush2.msra.mxu0 0.0
    %157 = vmatprep.subr.mxu0 0.0
    %158 = vmatpush2.msra.mxu0 0.0
    %159 = vmatprep.subr.mxu0 0.0
    %160 = vmatpush2.msra.mxu0 0.0
    %161 = vmatprep.mubr.f32.mxu0 0.0
    %162 = vmatmul.mubr.f32.gmra.mxu0 %v73
    %v163 = vpop.f32.mrf.mxu0
    %v164 = vadd.f32 %v95, %v163
    %v165 = vpop.f32.mrf.mxu0
    %166 = vdwg.mxu0
    %v167 = vmul.f32 %v164, 0.01
    %v168 = vmax.f32 %v164, %v167
    %v169 = vld [vmem:[%s5] sm:$0x1]
    %v171 = vlaneseq
    %v172 = vshrl.u32 %v171, 7
    %v173 = vsub.s32 0, %v172
    %v174 = vrot.slane %v169, %v173
    %v176 = vmul.f32 %v168, %v174
    %177 = vadd.xlane.f32.xlu0 %v176
    %v178 = vpop.xlane.xlu0 %177
    %v179 = vld [vmem:[#allocation2] sm:$0x1]
    %v181 = vlaneseq
    %v182 = vshrl.u32 %v181, 7
    %v183 = vsub.s32 0, %v182
    %v184 = vrot.slane %v179, %v183
    %v186 = vadd.f32 %v178, %v184
    %v187 = vtanh.pop %v186
    %vm188 = vcmask 7168
    %189 = vst.msk [vmem:[%s7] sm:$0xff] %vm188, %v187
    // Predicated region
    $region34: #{actor_forward.1} parent=1 // pred_check
      _
    $region35: #{actor_forward.1} parent=1 // pred_check_branch
      %191 = sbr.rel (0) target = $region37
    $region36: #{actor_forward.1} parent=1 // pred_region
      _
    $region37: #{actor_forward.1} parent=1 // pred_fallthru
      _
    // Predicated region
    $region38: #{actor_forward.1} parent=1 // pred_check
      _
    $region39: #{actor_forward.1} parent=1 // pred_check_branch
      %193 = sbr.rel (0) target = $region41
    $region40: #{actor_forward.1} parent=1 // pred_region
      _
    $region41: #{actor_forward.1} parent=1 // pred_fallthru
      _
    %194 = vsyncpa [#allocation4], 1

</llo_original>
